<compile_context>
chip_gen: v6e
topology: v6e:2x2x1
jax: 0.10.0
libtpu: 0.0.40
codegen_flags: <defaults>
</compile_context>

<pallas_src>
import functools

import jax
import jax.numpy as jnp
import numpy as np
from jax.experimental import pallas as pl
from jax.experimental.pallas import tpu as pltpu

BN_EPS = 1e-5


def _round_up(x, m):
    return (x + m - 1) // m * m


def conv_inten_kernel(wl_ref, p2_ref, inten_ref, sum_ref, sq_ref):
    """One M-tile: fused complex conv (single MXU matmul) + |y|^2 + BN partial stats."""
    # (2*Cpad, 2*Kd) bf16 @ (2*Kd, TILE_M) bf16 -> (2*Cpad, TILE_M) f32
    y = jnp.dot(wl_ref[...], p2_ref[...], preferred_element_type=jnp.float32)
    cpad = y.shape[0] // 2
    y_real = y[:cpad, :]          # aligned sublane row-group
    y_imag = y[cpad:, :]
    inten = y_real * y_real + y_imag * y_imag          # (Cpad, TILE_M) f32
    inten_ref[...] = inten                             # lane-dense (128-multiple) store

    # Per-channel partial statistics for this tile (reduction over the lane/M axis).
    s = jnp.sum(inten, axis=1, keepdims=True)           # (Cpad, 1)
    q = jnp.sum(inten * inten, axis=1, keepdims=True)   # (Cpad, 1)
    sum_ref[...] = jnp.broadcast_to(s, sum_ref.shape)   # lane-broadcast -> dense store
    sq_ref[...] = jnp.broadcast_to(q, sq_ref.shape)


def bn_apply_kernel(a_ref, b_ref, x_ref, o_ref):
    """out = x * a + b with per-channel (sublane) scale/shift, lane-dense tiles."""
    o_ref[...] = x_ref[...] * a_ref[...] + b_ref[...]


def _im2col_t(x_pad, Ho, Wo, K):
    # (N, C, Hp, Wp) -> (C*K*K, N*Ho*Wo); rows ordered (c, ky, kx), cols ordered (n, ho, wo)
    cols = jnp.stack([x_pad[:, :, ky:ky + Ho, kx:kx + Wo]
                      for ky in range(K) for kx in range(K)], axis=2)   # (N, C, K*K, Ho, Wo)
    C = x_pad.shape[1]
    N = x_pad.shape[0]
    return cols.transpose(1, 2, 0, 3, 4).reshape(C * K * K, N * Ho * Wo)


def conv_block_forward(x, k_real, k_imag, w_scalar, *, padding=2, tile_m=512):
    """ConvBlock forward. x: (N, Cin, H, W) real intensity (input_complex=True)."""
    N, Cin, H, W = x.shape
    Cout, _, K, _ = k_real.shape
    assert tile_m % 128 == 0, "tile_m must be a multiple of 128 lanes"

    # NonLinear_Int2Phase: intensity -> unit-magnitude complex field exp(i*pi*x)
    # TODO(synk): NonLinear_Int2Phase source not provided; assuming exp(1j*pi*x).
    xr = jnp.cos(jnp.pi * x).astype(jnp.bfloat16)
    xi = jnp.sin(jnp.pi * x).astype(jnp.bfloat16)

    pad_cfg = ((0, 0), (0, 0), (padding, padding), (padding, padding))
    xr_p = jnp.pad(xr, pad_cfg)
    xi_p = jnp.pad(xi, pad_cfg)
    Ho = H + 2 * padding - K + 1
    Wo = W + 2 * padding - K + 1

    Kd = Cin * K * K
    Kd2 = 2 * Kd
    M = N * Ho * Wo
    M_pad = _round_up(M, tile_m)
    n_tiles = M_pad // tile_m
    Cpad = _round_up(Cout, 8)

    # TODO(synk): im2col patches are still materialized in HBM (K*K read amplification);
    # the next step is in-kernel patch extraction from a halo'd row-slab DMA.
    p2 = jnp.concatenate([_im2col_t(xr_p, Ho, Wo, K),
                          _im2col_t(xi_p, Ho, Wo, K)], axis=0)          # (2*Kd, M) bf16
    p2 = jnp.pad(p2, ((0, 0), (0, M_pad - M)))                          # (2*Kd, M_pad)

    # Block-structured complex weight; w_scalar folded in (BN output is invariant to it).
    s = w_scalar[0].astype(jnp.float32)
    wr = k_real.reshape(Cout, Kd) * s
    wi = k_imag.reshape(Cout, Kd) * s
    top = jnp.pad(jnp.concatenate([wr, -wi], axis=1), ((0, Cpad - Cout), (0, 0)))
    bot = jnp.pad(jnp.concatenate([wi, wr], axis=1), ((0, Cpad - Cout), (0, 0)))
    wl = jnp.concatenate([top, bot], axis=0).astype(jnp.bfloat16)       # (2*Cpad, 2*Kd)

    flops = 2 * (2 * Cpad) * Kd2 * M_pad
    bytes_accessed = (Kd2 * M_pad * 2 + 2 * Cpad * Kd2 * 2
                      + Cpad * M_pad * 4 + 2 * n_tiles * Cpad * 128 * 4)

    inten, sum_part, sq_part = pl.pallas_call(
        conv_inten_kernel,
        out_shape=(jax.ShapeDtypeStruct((Cpad, M_pad), jnp.float32),
                   jax.ShapeDtypeStruct((n_tiles * Cpad, 128), jnp.float32),
                   jax.ShapeDtypeStruct((n_tiles * Cpad, 128), jnp.float32)),
        grid=(n_tiles,),
        in_specs=[pl.BlockSpec((2 * Cpad, Kd2), lambda m: (0, 0)),   # weights: VMEM-resident
                  pl.BlockSpec((Kd2, tile_m), lambda m: (0, m))],    # patches: tiled over M
        out_specs=(pl.BlockSpec((Cpad, tile_m), lambda m: (0, m)),
                   pl.BlockSpec((Cpad, 128), lambda m: (m, 0)),
                   pl.BlockSpec((Cpad, 128), lambda m: (m, 0))),
        compiler_params=pltpu.CompilerParams(dimension_semantics=("parallel",)),
        cost_estimate=pl.CostEstimate(flops=flops, transcendentals=0,
                                      bytes_accessed=bytes_accessed),
    )(wl, p2)

    # Combine per-tile partials -> per-channel batch statistics (count = valid M only;
    # zero-padded M columns contribute exactly 0 to both sums).
    tot = jnp.sum(sum_part.reshape(n_tiles, Cpad, 128)[:, :, 0], axis=0)
    tot_sq = jnp.sum(sq_part.reshape(n_tiles, Cpad, 128)[:, :, 0], axis=0)
    mean = tot / M
    var = jnp.maximum(tot_sq / M - mean * mean, 0.0)
    a = jax.lax.rsqrt(var + BN_EPS)          # per-channel scale
    b = -mean * a                            # per-channel shift

    y = pl.pallas_call(
        bn_apply_kernel,
        out_shape=jax.ShapeDtypeStruct((Cpad, M_pad), jnp.float32),
        grid=(n_tiles,),
        in_specs=[pl.BlockSpec((Cpad, 1), lambda m: (0, 0)),         # scale: resident
                  pl.BlockSpec((Cpad, 1), lambda m: (0, 0)),         # shift: resident
                  pl.BlockSpec((Cpad, tile_m), lambda m: (0, m))],
        out_specs=pl.BlockSpec((Cpad, tile_m), lambda m: (0, m)),
        compiler_params=pltpu.CompilerParams(dimension_semantics=("parallel",)),
    )(a[:, None], b[:, None], inten)

    # (Cout, N*Ho*Wo) -> NCHW
    return y[:Cout, :M].reshape(Cout, N, Ho, Wo).transpose(1, 0, 2, 3)


def ref_forward(x, k_real, k_imag, padding):
    """Pure-JAX reference at matched precision (bf16 inputs, f32 accumulation)."""
    xr = jnp.cos(jnp.pi * x).astype(jnp.bfloat16)
    xi = jnp.sin(jnp.pi * x).astype(jnp.bfloat16)
    kr = k_real.astype(jnp.bfloat16)
    ki = k_imag.astype(jnp.bfloat16)

    def conv(a, w):
        return jax.lax.conv_general_dilated(
            a, w, window_strides=(1, 1),
            padding=[(padding, padding), (padding, padding)],
            dimension_numbers=("NCHW", "OIHW", "NCHW"),
            preferred_element_type=jnp.float32)

    y_real = conv(xr, kr) - conv(xi, ki)
    y_imag = conv(xi, kr) + conv(xr, ki)
    inten = y_real * y_real + y_imag * y_imag            # w_scalar = 1.0
    mean = jnp.mean(inten, axis=(0, 2, 3), keepdims=True)
    var = jnp.mean(jnp.square(inten - mean), axis=(0, 2, 3), keepdims=True)
    return (inten - mean) * jax.lax.rsqrt(var + BN_EPS)


if __name__ == "__main__":
    key = jax.random.PRNGKey(0)
    k_x, k_wr, k_wi = jax.random.split(key, 3)

    N, Cin, H, W = 2, 4, 16, 16
    Cout, K, padding = 8, 5, 2

    x = jax.random.normal(k_x, (N, Cin, H, W), jnp.float32)
    k_real = jax.random.normal(k_wr, (Cout, Cin, K, K), jnp.float32)
    k_imag = jax.random.normal(k_wi, (Cout, Cin, K, K), jnp.float32)
    w_scalar = jnp.ones((1,), jnp.float32)   # scalar=False -> fixed w_scalar = 1.0

    # tile_m=128 -> 4 M-tiles at this small size, exercising the tiled/pipelined path.
    fwd = jax.jit(functools.partial(conv_block_forward, padding=padding, tile_m=128))
    out = jax.block_until_ready(fwd(x, k_real, k_imag, w_scalar))
    assert out.shape == (N, Cout, H, W)

    ref = ref_forward(x, k_real, k_imag, padding)
    np.testing.assert_allclose(np.asarray(out), np.asarray(ref), rtol=2e-3, atol=2e-3)

    print("KERNEL_OK")
</pallas_src>

<mosaic_0001>
module attributes {stable_mosaic.version = 11 : i64} {
  func.func @conv_inten_kernel(%arg0: i32, %arg1: memref<16x200xbf16, #tpu.memory_space<vmem>>, %arg2: memref<200x128xbf16, #tpu.memory_space<vmem>>, %arg3: memref<8x128xf32, #tpu.memory_space<vmem>>, %arg4: memref<8x128xf32, #tpu.memory_space<vmem>>, %arg5: memref<8x128xf32, #tpu.memory_space<vmem>>) attributes {dimension_semantics = [#tpu.dimension_semantics<parallel>], iteration_bounds = array<i64: 4>, scalar_prefetch = 0 : i64, scratch_operands = 0 : i64, tpu.core_type = #tpu.core_type<tc>, window_params = [{pipeline_mode = #tpu.pipeline_mode<synchronous>, transform_indices = @transform_0, window_bounds = array<i64: 16, 200>}, {transform_indices = @transform_1, window_bounds = array<i64: 200, 128>}, {transform_indices = @transform_2, window_bounds = array<i64: 8, 128>}, {transform_indices = @transform_3, window_bounds = array<i64: 8, 128>}, {transform_indices = @transform_4, window_bounds = array<i64: 8, 128>}]} {
    %c0 = arith.constant 0 : index
    %c0_0 = arith.constant 0 : index
    %0 = vector.load %arg1[%c0, %c0_0] : memref<16x200xbf16, #tpu.memory_space<vmem>>, vector<16x200xbf16>
    %c0_1 = arith.constant 0 : index
    %c0_2 = arith.constant 0 : index
    %1 = vector.load %arg2[%c0_1, %c0_2] : memref<200x128xbf16, #tpu.memory_space<vmem>>, vector<200x128xbf16>
    %cst = arith.constant dense<0.000000e+00> : vector<16x128xf32>
    %2 = tpu.matmul %0, %1, %cst {dimension_numbers = #tpu.dot_dimension_numbers<[1], [0], [0], [1], [0, 0, 1, 1], [], []>} : vector<16x200xbf16>, vector<200x128xbf16>, vector<16x128xf32> -> vector<16x128xf32>
    %3 = vector.extract_strided_slice %2 {offsets = [0, 0], sizes = [8, 128], strides = [1, 1]} : vector<16x128xf32> to vector<8x128xf32>
    %4 = vector.extract_strided_slice %2 {offsets = [8, 0], sizes = [8, 128], strides = [1, 1]} : vector<16x128xf32> to vector<8x128xf32>
    %5 = arith.mulf %3, %3 : vector<8x128xf32>
    %6 = arith.mulf %4, %4 : vector<8x128xf32>
    %7 = arith.addf %5, %6 : vector<8x128xf32>
    %c0_3 = arith.constant 0 : index
    %c0_4 = arith.constant 0 : index
    %8 = vector.load %arg3[%c0_3, %c0_4] : memref<8x128xf32, #tpu.memory_space<vmem>>, vector<8x128xf32>
    tpu.vector_store %arg3[%c0_3, %c0_4], %7 {strides = array<i32>} : memref<8x128xf32, #tpu.memory_space<vmem>>, vector<8x128xf32>,
    %cst_5 = arith.constant dense<0.000000e+00> : vector<8xf32>
    %9 = vector.multi_reduction <add>, %7, %cst_5 [1] : vector<8x128xf32> to vector<8xf32>
    %10 = vector.shape_cast %9 : vector<8xf32> to vector<8x1xf32>
    %11 = arith.mulf %7, %7 : vector<8x128xf32>
    %cst_6 = arith.constant dense<0.000000e+00> : vector<8xf32>
    %12 = vector.multi_reduction <add>, %11, %cst_6 [1] : vector<8x128xf32> to vector<8xf32>
    %13 = vector.shape_cast %12 : vector<8xf32> to vector<8x1xf32>
    %14 = vector.shape_cast %10 : vector<8x1xf32> to vector<8x1xf32>
    %15 = vector.broadcast %14 : vector<8x1xf32> to vector<8x128xf32>
    %c0_7 = arith.constant 0 : index
    %c0_8 = arith.constant 0 : index
    %16 = vector.load %arg4[%c0_7, %c0_8] : memref<8x128xf32, #tpu.memory_space<vmem>>, vector<8x128xf32>
    tpu.vector_store %arg4[%c0_7, %c0_8], %15 {strides = array<i32>} : memref<8x128xf32, #tpu.memory_space<vmem>>, vector<8x128xf32>,
    %17 = vector.shape_cast %13 : vector<8x1xf32> to vector<8x1xf32>
    %18 = vector.broadcast %17 : vector<8x1xf32> to vector<8x128xf32>
    %c0_9 = arith.constant 0 : index
    %c0_10 = arith.constant 0 : index
    %19 = vector.load %arg5[%c0_9, %c0_10] : memref<8x128xf32, #tpu.memory_space<vmem>>, vector<8x128xf32>
    tpu.vector_store %arg5[%c0_9, %c0_10], %18 {strides = array<i32>} : memref<8x128xf32, #tpu.memory_space<vmem>>, vector<8x128xf32>,
    return
  }
  func.func @transform_0(%arg0: i32) -> (i32, i32) {
    %c0_i32 = arith.constant 0 : i32
    %c0_i32_0 = arith.constant 0 : i32
    %c0_i32_1 = arith.constant 0 : i32
    return %c0_i32, %c0_i32_0 : i32, i32
  }
  func.func @transform_1(%arg0: i32) -> (i32, i32) {
    %c0_i32 = arith.constant 0 : i32
    %c0_i32_0 = arith.constant 0 : i32
    return %c0_i32, %arg0 : i32, i32
  }
  func.func @transform_2(%arg0: i32) -> (i32, i32) {
    %c0_i32 = arith.constant 0 : i32
    %c0_i32_0 = arith.constant 0 : i32
    return %c0_i32, %arg0 : i32, i32
  }
  func.func @transform_3(%arg0: i32) -> (i32, i32) {
    %c0_i32 = arith.constant 0 : i32
    %c0_i32_0 = arith.constant 0 : i32
    return %arg0, %c0_i32 : i32, i32
  }
  func.func @transform_4(%arg0: i32) -> (i32, i32) {
    %c0_i32 = arith.constant 0 : i32
    %c0_i32_0 = arith.constant 0 : i32
    return %arg0, %c0_i32 : i32, i32
  }
}

module attributes {stable_mosaic.version = 11 : i64} {
  func.func @bn_apply_kernel(%arg0: i32, %arg1: memref<8x1xf32, #tpu.memory_space<vmem>>, %arg2: memref<8x1xf32, #tpu.memory_space<vmem>>, %arg3: memref<8x128xf32, #tpu.memory_space<vmem>>, %arg4: memref<8x128xf32, #tpu.memory_space<vmem>>) attributes {dimension_semantics = [#tpu.dimension_semantics<parallel>], iteration_bounds = array<i64: 4>, scalar_prefetch = 0 : i64, scratch_operands = 0 : i64, tpu.core_type = #tpu.core_type<tc>, window_params = [{pipeline_mode = #tpu.pipeline_mode<synchronous>, transform_indices = @transform_0, window_bounds = array<i64: 8, 1>}, {pipeline_mode = #tpu.pipeline_mode<synchronous>, transform_indices = @transform_1, window_bounds = array<i64: 8, 1>}, {transform_indices = @transform_2, window_bounds = array<i64: 8, 128>}, {transform_indices = @transform_3, window_bounds = array<i64: 8, 128>}]} {
    %c0 = arith.constant 0 : index
    %c0_0 = arith.constant 0 : index
    %0 = vector.load %arg3[%c0, %c0_0] : memref<8x128xf32, #tpu.memory_space<vmem>>, vector<8x128xf32>
    %c0_1 = arith.constant 0 : index
    %c0_2 = arith.constant 0 : index
    %1 = vector.load %arg1[%c0_1, %c0_2] : memref<8x1xf32, #tpu.memory_space<vmem>>, vector<8x1xf32>
    %2 = vector.broadcast %1 : vector<8x1xf32> to vector<8x128xf32>
    %3 = arith.mulf %0, %2 : vector<8x128xf32>
    %c0_3 = arith.constant 0 : index
    %c0_4 = arith.constant 0 : index
    %4 = vector.load %arg2[%c0_3, %c0_4] : memref<8x1xf32, #tpu.memory_space<vmem>>, vector<8x1xf32>
    %5 = vector.broadcast %4 : vector<8x1xf32> to vector<8x128xf32>
    %6 = arith.addf %3, %5 : vector<8x128xf32>
    %c0_5 = arith.constant 0 : index
    %c0_6 = arith.constant 0 : index
    %7 = vector.load %arg4[%c0_5, %c0_6] : memref<8x128xf32, #tpu.memory_space<vmem>>, vector<8x128xf32>
    tpu.vector_store %arg4[%c0_5, %c0_6], %6 {strides = array<i32>} : memref<8x128xf32, #tpu.memory_space<vmem>>, vector<8x128xf32>,
    return
  }
  func.func @transform_0(%arg0: i32) -> (i32, i32) {
    %c0_i32 = arith.constant 0 : i32
    %c0_i32_0 = arith.constant 0 : i32
    %c0_i32_1 = arith.constant 0 : i32
    return %c0_i32, %c0_i32_0 : i32, i32
  }
  func.func @transform_1(%arg0: i32) -> (i32, i32) {
    %c0_i32 = arith.constant 0 : i32
    %c0_i32_0 = arith.constant 0 : i32
    %c0_i32_1 = arith.constant 0 : i32
    return %c0_i32, %c0_i32_0 : i32, i32
  }
  func.func @transform_2(%arg0: i32) -> (i32, i32) {
    %c0_i32 = arith.constant 0 : i32
    %c0_i32_0 = arith.constant 0 : i32
    return %c0_i32, %arg0 : i32, i32
  }
  func.func @transform_3(%arg0: i32) -> (i32, i32) {
    %c0_i32 = arith.constant 0 : i32
    %c0_i32_0 = arith.constant 0 : i32
    return %c0_i32, %arg0 : i32, i32
  }
}

</mosaic_0001>

<llo_original>
// kernel: mul.25
$region0: #{mul.25}
  #allocation0 [shape = 's32[1]{0}', space=sflag, size = 0x4, scoped, tag = 'scoped memory for mul.25']
  %s0 = inlined_call_operand.vmem [shape: f32[8,1], index: 0, kind: input, shape index: {}]
  %s1 = inlined_call_operand.vmem [shape: f32[8,1], index: 1, kind: input, shape index: {}]
  %s2 = inlined_call_operand.vmem [shape: f32[8,1], index: 2, kind: output, shape index: {}]
  %v3 = vld [vmem:[%s0] sm:$0xff]
  %v4 = vld [vmem:[%s1] sm:$0xff]
  %5 = xla_tuple %v3, %v4
  %6 = xla_tuple %5
  %v7 = vmul.f32 %v3, %v4
  %8 = xla_tuple %v7
  %9 = vst [vmem:[%s2] sm:$0xff] %v7

// kernel: conv_block_forward.3
$region0: #{conv_block_forward.3}
  #allocation0 [shape = 'u32[]', space=smem, size = 0x4, offset = 0x4, fixed_abs, tag = 'smem constant byte address 0x4 - core index']
  #allocation1 [shape = 'u32[144,128]{1,0:T(1,128)}', space=vmem, size = 0x12000, scoped, tag = 'internal scratch']
  %s0 = inlined_call_operand.vmem [shape: f32[8,1], index: 0, kind: input, shape index: {}]
  %s1 = inlined_call_operand.vmem [shape: f32[8,1], index: 1, kind: input, shape index: {}]
  %s2 = inlined_call_operand.vmem [shape: f32[8,512], index: 2, kind: input, shape index: {}]
  %s3 = inlined_call_operand.vmem [shape: f32[8,512], index: 3, kind: output, shape index: {}]
  %s4 = sld [smem:[#allocation0]]
  $region45: #{conv_block_forward.3} parent=0
    _
  %s6 = ssub.s32 1, %s4
  %s7 = scalar_select 0, %s6, %s4
  loop: start=0, step=1, limit=6
  $region2: #{conv_block_forward.3} parent=0 // loop_pre_header
    _
  $region3: #{conv_block_forward.3} parent=0 // loop_header
    %s9 = sphi 0, %s13
    %p10 = scmp.ge.s32.totalorder %s9, 6
    %s17 = sphi 0, %s17
    %s19 = sphi 0, %s17
    %s20 = sphi 0, %s19
    %s34 = sphi 0, %s20
    %s38 = sphi 0, %s38
    %s40 = sphi 0, %s38
    %s41 = sphi 0, %s40
    %s55 = sphi 0, %s41
    %s61 = sphi 0, %s63
    %s64 = sphi 0, %s61
    %s65 = sphi 0, %s64
    %s81 = sphi 0, %s65
    %s87 = sphi 0, %s89
    %s90 = sphi 0, %s87
    %s91 = sphi 0, %s90
    %s107 = sphi 0, %s91
  $region4: #{conv_block_forward.3} parent=0 // loop_header_branch
    %12 = sbr.rel (%p10) target = $region8
  $region5: #{conv_block_forward.3} parent=0 // loop_body
    %s14 = ssub.s32 %s9, 1
    %s15 = ssub.s32 %s9, 2
    %s16 = sadd.s32 %s9, 1
    %s18 = sadd.s32 %s17, 1
    %p21 = scmp.eq.s32.totalorder %s9, 3
    %p22 = scmp.ne.s32.totalorder %s17, %s19
    %p23 = scmp.eq.s32.totalorder %s9, 0
    %p24 = por %p22, %p23
    %p25 = scmp.ne.s32.totalorder %s17, %s19
    %p26 = scmp.eq.s32.totalorder %s14, 3
    %p27 = por %p25, %p26
    %p28 = scmp.ne.s32.totalorder %s19, %s20
    %p29 = scmp.eq.s32.totalorder %s14, 0
    %p30 = por %p28, %p29
    %p31 = scmp.ne.s32.totalorder %s19, %s20
    %p32 = scmp.eq.s32.totalorder %s15, 3
    %p33 = por %p31, %p32
    %p35 = scmp.ne.s32.totalorder %s20, %s34
    %p36 = scmp.eq.s32.totalorder %s15, 0
    %p37 = por %p35, %p36
    %s39 = sadd.s32 %s38, 1
    %p42 = scmp.eq.s32.totalorder %s9, 3
    %p43 = scmp.ne.s32.totalorder %s38, %s40
    %p44 = scmp.eq.s32.totalorder %s9, 0
    %p45 = por %p43, %p44
    %p46 = scmp.ne.s32.totalorder %s38, %s40
    %p47 = scmp.eq.s32.totalorder %s14, 3
    %p48 = por %p46, %p47
    %p49 = scmp.ne.s32.totalorder %s40, %s41
    %p50 = scmp.eq.s32.totalorder %s14, 0
    %p51 = por %p49, %p50
    %p52 = scmp.ne.s32.totalorder %s40, %s41
    %p53 = scmp.eq.s32.totalorder %s15, 3
    %p54 = por %p52, %p53
    %p56 = scmp.ne.s32.totalorder %s41, %s55
    %p57 = scmp.eq.s32.totalorder %s15, 0
    %p58 = por %p56, %p57
    %s59 = ssub.s32 %s9, %s16
    %p60 = scmp.eq.s32.totalorder %s59, 0
    %s62 = sadd.s32 %s61, 1
    %s63 = scalar_select %p60, %s61, %s62
    %p66 = pneg %p60
    %p67 = scmp.eq.s32.totalorder %s9, 3
    %p68 = por %p66, %p67
    %p69 = scmp.ne.s32.totalorder %s61, %s64
    %p70 = scmp.eq.s32.totalorder %s9, 0
    %p71 = por %p69, %p70
    %p72 = scmp.ne.s32.totalorder %s61, %s64
    %p73 = scmp.eq.s32.totalorder %s14, 3
    %p74 = por %p72, %p73
    %p75 = scmp.ne.s32.totalorder %s64, %s65
    %p76 = scmp.eq.s32.totalorder %s14, 0
    %p77 = por %p75, %p76
    %p78 = scmp.ne.s32.totalorder %s64, %s65
    %p79 = scmp.eq.s32.totalorder %s15, 3
    %p80 = por %p78, %p79
    %p82 = scmp.ne.s32.totalorder %s65, %s81
    %p83 = scmp.eq.s32.totalorder %s15, 0
    %p84 = por %p82, %p83
    %s85 = ssub.s32 %s9, %s16
    %p86 = scmp.eq.s32.totalorder %s85, 0
    %s88 = sadd.s32 %s87, 1
    %s89 = scalar_select %p86, %s87, %s88
    %p92 = pneg %p86
    %p93 = scmp.eq.s32.totalorder %s9, 3
    %p94 = por %p92, %p93
    %p95 = scmp.ne.s32.totalorder %s87, %s90
    %p96 = scmp.eq.s32.totalorder %s9, 0
    %p97 = por %p95, %p96
    %p98 = scmp.ne.s32.totalorder %s87, %s90
    %p99 = scmp.eq.s32.totalorder %s14, 3
    %p100 = por %p98, %p99
    %p101 = scmp.ne.s32.totalorder %s90, %s91
    %p102 = scmp.eq.s32.totalorder %s14, 0
    %p103 = por %p101, %p102
    %p104 = scmp.ne.s32.totalorder %s90, %s91
    %p105 = scmp.eq.s32.totalorder %s15, 3
    %p106 = por %p104, %p105
    %p108 = scmp.ne.s32.totalorder %s91, %s107
    %p109 = scmp.eq.s32.totalorder %s15, 0
    %p110 = por %p108, %p109
    %p111 = scmp.le.s32.totalorder 1, %s9
    %p112 = scmp.lt.s32.totalorder %s9, 5
    %p113 = pnand %p111, %p112
    %p114 = pneg %p113
    // Predicated region
    $region9: #{conv_block_forward.3} parent=5 // pred_check
      _
    $region10: #{conv_block_forward.3} parent=5 // pred_check_branch
      %116 = sbr.rel (%p113) target = $region12
    $region11: #{conv_block_forward.3} parent=5 // pred_region
      %s117 = ssub.s32 %s9, 1
      // Predicated region
      $region13: #{conv_block_forward.3} parent=11 // pred_check
        %p118 = pneg %p30
      $region14: #{conv_block_forward.3} parent=11 // pred_check_branch
        %120 = sbr.rel (%p118) target = $region16
      $region15: #{conv_block_forward.3} parent=11 // pred_region
        _
      $region16: #{conv_block_forward.3} parent=11 // pred_fallthru
        _
      // Predicated region
      $region17: #{conv_block_forward.3} parent=11 // pred_check
        %p121 = pneg %p51
      $region18: #{conv_block_forward.3} parent=11 // pred_check_branch
        %123 = sbr.rel (%p121) target = $region20
      $region19: #{conv_block_forward.3} parent=11 // pred_region
        _
      $region20: #{conv_block_forward.3} parent=11 // pred_fallthru
        _
    $region12: #{conv_block_forward.3} parent=5 // pred_fallthru
      _
    %p124 = scmp.lt.s32.totalorder %s9, 4
    // Predicated region
    $region21: #{conv_block_forward.3} parent=5 // pred_check
      %p125 = pneg %p124
    $region22: #{conv_block_forward.3} parent=5 // pred_check_branch
      %127 = sbr.rel (%p125) target = $region24
    $region23: #{conv_block_forward.3} parent=5 // pred_region
      // Predicated region
      $region25: #{conv_block_forward.3} parent=23 // pred_check
        %p128 = pneg %p71
      $region26: #{conv_block_forward.3} parent=23 // pred_check_branch
        %130 = sbr.rel (%p128) target = $region28
      $region27: #{conv_block_forward.3} parent=23 // pred_region
        %p131 = scmp.lt.s32.totalorder %s9, 3
        %s132 = scalar_select %p131, %s9, 3
        %s133 = smul.addr %s132, 8
        %s134 = scalar_lea.vmem %s2, %s133
      $region28: #{conv_block_forward.3} parent=23 // pred_fallthru
        _
    $region24: #{conv_block_forward.3} parent=5 // pred_fallthru
      _
    %p135 = scmp.le.s32.totalorder 1, %s9
    %p136 = scmp.lt.s32.totalorder %s9, 5
    %p137 = pnand %p135, %p136
    %p138 = pneg %p137
    // Predicated region
    $region29: #{conv_block_forward.3} parent=5 // pred_check
      _
    $region30: #{conv_block_forward.3} parent=5 // pred_check_branch
      %140 = sbr.rel (%p137) target = $region32
    $region31: #{conv_block_forward.3} parent=5 // pred_region
      %s141 = ssub.s32 %s9, 1
      %p142 = pneg %p30
      %p143 = pneg %p27
      %p144 = pneg %p51
      %p145 = pneg %p48
      %p146 = scmp.lt.s32.totalorder %s14, 3
      %s147 = scalar_select %p146, %s14, 3
      %s148 = smul.addr %s147, 8
      %s149 = scalar_lea.vmem %s2, %s148
      %p150 = pneg %p77
      %p151 = pneg %p74
      %p152 = pneg %p103
      %p153 = pneg %p100
      %p154 = scmp.lt.s32.totalorder %s14, 3
      %s155 = scalar_select %p154, %s14, 3
      %s156 = smul.addr %s155, 8
      %s157 = scalar_lea.vmem %s3, %s156
      %p158 = scmp.lt.s32.totalorder %s14, 3
      %s159 = scalar_select %p158, %s14, 3
      %s160 = smul.addr %s159, 8
      %s161 = scalar_lea.vmem %s2, %s160
      %p162 = scmp.lt.s32.totalorder %s14, 3
      %s163 = scalar_select %p162, %s14, 3
      %s164 = smul.addr %s163, 8
      %s165 = scalar_lea.vmem %s3, %s164
      %v166 = vld [vmem:[%s161] sm:$0xff]
      %v167 = vld [vmem:[%s0] sm:$0xff]
      %169 = vset.pattern.permute.xlu0 0
      %170 = vperm.xlu0 %169, %v167
      %v171 = vpop.permute.xlu0 %170
      %v173 = vmul.f32 %v166, %v171
      %v174 = vld [vmem:[%s1] sm:$0xff]
      %176 = vset.pattern.permute.xlu0 0
      %177 = vperm.xlu0 %176, %v174
      %v178 = vpop.permute.xlu0 %177
      %v180 = vadd.f32 %v173, %v178
      %181 = vst [vmem:[%s165] sm:$0xff] %v180
      %p182 = scmp.lt.s32.totalorder %s14, 3
      %s183 = scalar_select %p182, %s14, 3
      %s184 = smul.addr %s183, 8
      %s185 = scalar_lea.vmem %s3, %s184
      // Predicated region
      $region33: #{conv_block_forward.3} parent=31 // pred_check
        %p186 = pneg %p100
      $region34: #{conv_block_forward.3} parent=31 // pred_check_branch
        %188 = sbr.rel (%p186) target = $region36
      $region35: #{conv_block_forward.3} parent=31 // pred_region
        _
      $region36: #{conv_block_forward.3} parent=31 // pred_fallthru
        _
    $region32: #{conv_block_forward.3} parent=5 // pred_fallthru
      _
    %p189 = scmp.le.s32.totalorder 2, %s9
    // Predicated region
    $region37: #{conv_block_forward.3} parent=5 // pred_check
      %p190 = pneg %p189
    $region38: #{conv_block_forward.3} parent=5 // pred_check_branch
      %192 = sbr.rel (%p190) target = $region40
    $region39: #{conv_block_forward.3} parent=5 // pred_region
      %s193 = ssub.s32 %s9, 2
      // Predicated region
      $region41: #{conv_block_forward.3} parent=39 // pred_check
        %p194 = pneg %p106
      $region42: #{conv_block_forward.3} parent=39 // pred_check_branch
        %196 = sbr.rel (%p194) target = $region44
      $region43: #{conv_block_forward.3} parent=39 // pred_region
        %p197 = scmp.lt.s32.totalorder %s15, 3
        %s198 = scalar_select %p197, %s15, 3
        %s199 = smul.addr %s198, 8
        %s200 = scalar_lea.vmem %s3, %s199
      $region44: #{conv_block_forward.3} parent=39 // pred_fallthru
        _
    $region40: #{conv_block_forward.3} parent=5 // pred_fallthru
      _
  $region6: #{conv_block_forward.3} parent=0 // loop_footer
    %s13 = sadd.s32 1, %s9
  $region7: #{conv_block_forward.3} parent=0 // loop_footer_branch
    %8 = sbr.rel target = $region3
  $region8: #{conv_block_forward.3} parent=0 // loop_exit
    _

// kernel: conv_block_forward.2
$region0: #{conv_block_forward.2}
  #allocation0 [shape = 'u32[]', space=smem, size = 0x4, offset = 0x4, fixed_abs, tag = 'smem constant byte address 0x4 - core index']
  #allocation1 [shape = 'u32[144,128]{1,0:T(1,128)}', space=vmem, size = 0x12000, scoped, tag = 'internal scratch']
  %s0 = inlined_call_operand.vmem [shape: bf16[16,200], index: 0, kind: input, shape index: {}]
  %s1 = inlined_call_operand.vmem [shape: bf16[200,512], index: 1, kind: input, shape index: {}]
  %s2 = inlined_call_operand.vmem [shape: f32[8,512], index: 2, kind: output, shape index: {0}]
  %s3 = inlined_call_operand.vmem [shape: f32[32,128], index: 3, kind: output, shape index: {1}]
  %s4 = inlined_call_operand.vmem [shape: f32[32,128], index: 4, kind: output, shape index: {2}]
  %5 = xla_tuple %s2, %s3, %s4
  %s6 = sld [smem:[#allocation0]]
  $region98: #{conv_block_forward.2} parent=0
    _
  %s8 = ssub.s32 1, %s6
  %s9 = scalar_select 0, %s8, %s6
  $region1: #{conv_block_forward.2} parent=0
    #allocation2 [shape = 'u8[102400]{0}', space=vmem, size = 0x19000, scoped, tag = 'input window, operand 1']
    loop: start=0, step=1, limit=6
    $region2: #{conv_block_forward.2} parent=1 // loop_pre_header
      _
    $region3: #{conv_block_forward.2} parent=1 // loop_header
      %s11 = sphi 0, %s15
      %p12 = scmp.ge.s32.totalorder %s11, 6
      %s19 = sphi 0, %s19
      %s21 = sphi 0, %s19
      %s22 = sphi 0, %s21
      %s36 = sphi 0, %s22
      %s42 = sphi 0, %s44
      %s45 = sphi 0, %s42
      %s46 = sphi 0, %s45
      %s62 = sphi 0, %s46
      %s68 = sphi 0, %s70
      %s71 = sphi 0, %s68
      %s72 = sphi 0, %s71
      %s88 = sphi 0, %s72
      %s94 = sphi 0, %s96
      %s97 = sphi 0, %s94
      %s98 = sphi 0, %s97
      %s114 = sphi 0, %s98
      %s120 = sphi 0, %s122
      %s123 = sphi 0, %s120
      %s124 = sphi 0, %s123
      %s140 = sphi 0, %s124
    $region4: #{conv_block_forward.2} parent=1 // loop_header_branch
      %14 = sbr.rel (%p12) target = $region8
    $region5: #{conv_block_forward.2} parent=1 // loop_body
      %s16 = ssub.s32 %s11, 1
      %s17 = ssub.s32 %s11, 2
      %s18 = sadd.s32 %s11, 1
      %s20 = sadd.s32 %s19, 1
      %p23 = scmp.eq.s32.totalorder %s11, 3
      %p24 = scmp.ne.s32.totalorder %s19, %s21
      %p25 = scmp.eq.s32.totalorder %s11, 0
      %p26 = por %p24, %p25
      %p27 = scmp.ne.s32.totalorder %s19, %s21
      %p28 = scmp.eq.s32.totalorder %s16, 3
      %p29 = por %p27, %p28
      %p30 = scmp.ne.s32.totalorder %s21, %s22
      %p31 = scmp.eq.s32.totalorder %s16, 0
      %p32 = por %p30, %p31
      %p33 = scmp.ne.s32.totalorder %s21, %s22
      %p34 = scmp.eq.s32.totalorder %s17, 3
      %p35 = por %p33, %p34
      %p37 = scmp.ne.s32.totalorder %s22, %s36
      %p38 = scmp.eq.s32.totalorder %s17, 0
      %p39 = por %p37, %p38
      %s40 = ssub.s32 %s11, %s18
      %p41 = scmp.eq.s32.totalorder %s40, 0
      %s43 = sadd.s32 %s42, 1
      %s44 = scalar_select %p41, %s42, %s43
      %p47 = pneg %p41
      %p48 = scmp.eq.s32.totalorder %s11, 3
      %p49 = por %p47, %p48
      %p50 = scmp.ne.s32.totalorder %s42, %s45
      %p51 = scmp.eq.s32.totalorder %s11, 0
      %p52 = por %p50, %p51
      %p53 = scmp.ne.s32.totalorder %s42, %s45
      %p54 = scmp.eq.s32.totalorder %s16, 3
      %p55 = por %p53, %p54
      %p56 = scmp.ne.s32.totalorder %s45, %s46
      %p57 = scmp.eq.s32.totalorder %s16, 0
      %p58 = por %p56, %p57
      %p59 = scmp.ne.s32.totalorder %s45, %s46
      %p60 = scmp.eq.s32.totalorder %s17, 3
      %p61 = por %p59, %p60
      %p63 = scmp.ne.s32.totalorder %s46, %s62
      %p64 = scmp.eq.s32.totalorder %s17, 0
      %p65 = por %p63, %p64
      %s66 = ssub.s32 %s11, %s18
      %p67 = scmp.eq.s32.totalorder %s66, 0
      %s69 = sadd.s32 %s68, 1
      %s70 = scalar_select %p67, %s68, %s69
      %p73 = pneg %p67
      %p74 = scmp.eq.s32.totalorder %s11, 3
      %p75 = por %p73, %p74
      %p76 = scmp.ne.s32.totalorder %s68, %s71
      %p77 = scmp.eq.s32.totalorder %s11, 0
      %p78 = por %p76, %p77
      %p79 = scmp.ne.s32.totalorder %s68, %s71
      %p80 = scmp.eq.s32.totalorder %s16, 3
      %p81 = por %p79, %p80
      %p82 = scmp.ne.s32.totalorder %s71, %s72
      %p83 = scmp.eq.s32.totalorder %s16, 0
      %p84 = por %p82, %p83
      %p85 = scmp.ne.s32.totalorder %s71, %s72
      %p86 = scmp.eq.s32.totalorder %s17, 3
      %p87 = por %p85, %p86
      %p89 = scmp.ne.s32.totalorder %s72, %s88
      %p90 = scmp.eq.s32.totalorder %s17, 0
      %p91 = por %p89, %p90
      %s92 = ssub.s32 %s11, %s18
      %p93 = scmp.eq.s32.totalorder %s92, 0
      %s95 = sadd.s32 %s94, 1
      %s96 = scalar_select %p93, %s94, %s95
      %p99 = pneg %p93
      %p100 = scmp.eq.s32.totalorder %s11, 3
      %p101 = por %p99, %p100
      %p102 = scmp.ne.s32.totalorder %s94, %s97
      %p103 = scmp.eq.s32.totalorder %s11, 0
      %p104 = por %p102, %p103
      %p105 = scmp.ne.s32.totalorder %s94, %s97
      %p106 = scmp.eq.s32.totalorder %s16, 3
      %p107 = por %p105, %p106
      %p108 = scmp.ne.s32.totalorder %s97, %s98
      %p109 = scmp.eq.s32.totalorder %s16, 0
      %p110 = por %p108, %p109
      %p111 = scmp.ne.s32.totalorder %s97, %s98
      %p112 = scmp.eq.s32.totalorder %s17, 3
      %p113 = por %p111, %p112
      %p115 = scmp.ne.s32.totalorder %s98, %s114
      %p116 = scmp.eq.s32.totalorder %s17, 0
      %p117 = por %p115, %p116
      %s118 = ssub.s32 %s11, %s18
      %p119 = scmp.eq.s32.totalorder %s118, 0
      %s121 = sadd.s32 %s120, 1
      %s122 = scalar_select %p119, %s120, %s121
      %p125 = pneg %p119
      %p126 = scmp.eq.s32.totalorder %s11, 3
      %p127 = por %p125, %p126
      %p128 = scmp.ne.s32.totalorder %s120, %s123
      %p129 = scmp.eq.s32.totalorder %s11, 0
      %p130 = por %p128, %p129
      %p131 = scmp.ne.s32.totalorder %s120, %s123
      %p132 = scmp.eq.s32.totalorder %s16, 3
      %p133 = por %p131, %p132
      %p134 = scmp.ne.s32.totalorder %s123, %s124
      %p135 = scmp.eq.s32.totalorder %s16, 0
      %p136 = por %p134, %p135
      %p137 = scmp.ne.s32.totalorder %s123, %s124
      %p138 = scmp.eq.s32.totalorder %s17, 3
      %p139 = por %p137, %p138
      %p141 = scmp.ne.s32.totalorder %s124, %s140
      %p142 = scmp.eq.s32.totalorder %s17, 0
      %p143 = por %p141, %p142
      %p144 = scmp.le.s32.totalorder 1, %s11
      %p145 = scmp.lt.s32.totalorder %s11, 5
      %p146 = pnand %p144, %p145
      %p147 = pneg %p146
      // Predicated region
      $region9: #{conv_block_forward.2} parent=5 // pred_check
        _
      $region10: #{conv_block_forward.2} parent=5 // pred_check_branch
        %149 = sbr.rel (%p146) target = $region12
      $region11: #{conv_block_forward.2} parent=5 // pred_region
        %s150 = ssub.s32 %s11, 1
        // Predicated region
        $region13: #{conv_block_forward.2} parent=11 // pred_check
          %p151 = pneg %p32
        $region14: #{conv_block_forward.2} parent=11 // pred_check_branch
          %153 = sbr.rel (%p151) target = $region16
        $region15: #{conv_block_forward.2} parent=11 // pred_region
          _
        $region16: #{conv_block_forward.2} parent=11 // pred_fallthru
          _
      $region12: #{conv_block_forward.2} parent=5 // pred_fallthru
        _
      %p154 = scmp.lt.s32.totalorder %s11, 4
      // Predicated region
      $region17: #{conv_block_forward.2} parent=5 // pred_check
        %p155 = pneg %p154
      $region18: #{conv_block_forward.2} parent=5 // pred_check_branch
        %157 = sbr.rel (%p155) target = $region20
      $region19: #{conv_block_forward.2} parent=5 // pred_region
        // Predicated region
        $region21: #{conv_block_forward.2} parent=19 // pred_check
          %p158 = pneg %p52
        $region22: #{conv_block_forward.2} parent=19 // pred_check_branch
          %160 = sbr.rel (%p158) target = $region24
        $region23: #{conv_block_forward.2} parent=19 // pred_region
          %s161 = sand.u32 %s42, 1
          %s162 = sand.u32 %s42, 1
          %s163 = smul.addr %s162, 100
          %s164 = scalar_lea.vmem [#allocation2], %s163
          %s165 = smul.addr %s11, 4
          %s166 = scalar_lea.vmem %s1, %s165
          // Predicated region
          $region25: #{conv_block_forward.2} parent=23 // pred_check
            _
          $region26: #{conv_block_forward.2} parent=23 // pred_check_branch
            %168 = sbr.rel (0) target = $region28
          $region27: #{conv_block_forward.2} parent=23 // pred_region
            // Predicated region
            $region29: #{conv_block_forward.2} parent=27 // pred_check
              _
            $region30: #{conv_block_forward.2} parent=27 // pred_check_branch
              %170 = sbr.rel target = $region32
            $region31: #{conv_block_forward.2} parent=27 // pred_region
              // Predicated region
              $region44: #{conv_block_forward.2} parent=31 // pred_check
                _
              $region45: #{conv_block_forward.2} parent=31 // pred_check_branch
                %234 = sbr.rel (0) target = $region47
              $region46: #{conv_block_forward.2} parent=31 // pred_region
                loop: start=0, step=1, limit=1
                $region48: #{conv_block_forward.2} parent=46 // loop_pre_header
                  _
                $region49: #{conv_block_forward.2} parent=46 // loop_header
                  %s236 = sphi 0, %s240
                  %p237 = scmp.ge.s32.totalorder %s236, 1
                  %s241 = sphi %s166, %s166
                  %s242 = sphi %s164, %s164
                $region50: #{conv_block_forward.2} parent=46 // loop_header_branch
                  %239 = sbr.rel (%p237) target = $region54
                $region51: #{conv_block_forward.2} parent=46 // loop_body
                  _
                $region52: #{conv_block_forward.2} parent=46 // loop_footer
                  %s240 = sadd.s32 1, %s236
                $region53: #{conv_block_forward.2} parent=46 // loop_footer_branch
                  %235 = sbr.rel target = $region49
                $region54: #{conv_block_forward.2} parent=46 // loop_exit
                  _
                %s244 = ssub.s32 16, 1
                loop: start=0, step=1, limit=1
                $region55: #{conv_block_forward.2} parent=46 // loop_pre_header
                  _
                $region56: #{conv_block_forward.2} parent=46 // loop_header
                  %s246 = sphi 0, %s250
                  %p247 = scmp.ge.s32.totalorder %s246, 1
                  %s251 = sphi %s166, %s166
                  %s252 = sphi %s164, %s164
                $region57: #{conv_block_forward.2} parent=46 // loop_header_branch
                  %249 = sbr.rel (%p247) target = $region61
                $region58: #{conv_block_forward.2} parent=46 // loop_body
                  %v253 = vld [vmem:[%s251] sm:%s244]
                  %254 = vst [vmem:[%s252] sm:%s244] %v253
                  %v255 = vld [vmem:[%s251 + $0x10] sm:%s244]
                  %256 = vst [vmem:[%s252 + $0x4] sm:%s244] %v255
                  %v257 = vld [vmem:[%s251 + $0x20] sm:%s244]
                  %258 = vst [vmem:[%s252 + $0x8] sm:%s244] %v257
                  %v259 = vld [vmem:[%s251 + $0x30] sm:%s244]
                  %260 = vst [vmem:[%s252 + $0xc] sm:%s244] %v259
                  %v261 = vld [vmem:[%s251 + $0x40] sm:%s244]
                  %262 = vst [vmem:[%s252 + $0x10] sm:%s244] %v261
                  %v263 = vld [vmem:[%s251 + $0x50] sm:%s244]
                  %264 = vst [vmem:[%s252 + $0x14] sm:%s244] %v263
                  %v265 = vld [vmem:[%s251 + $0x60] sm:%s244]
                  %266 = vst [vmem:[%s252 + $0x18] sm:%s244] %v265
                  %v267 = vld [vmem:[%s251 + $0x70] sm:%s244]
                  %268 = vst [vmem:[%s252 + $0x1c] sm:%s244] %v267
                  %v269 = vld [vmem:[%s251 + $0x80] sm:%s244]
                  %270 = vst [vmem:[%s252 + $0x20] sm:%s244] %v269
                  %v271 = vld [vmem:[%s251 + $0x90] sm:%s244]
                  %272 = vst [vmem:[%s252 + $0x24] sm:%s244] %v271
                  %v273 = vld [vmem:[%s251 + $0xa0] sm:%s244]
                  %274 = vst [vmem:[%s252 + $0x28] sm:%s244] %v273
                  %v275 = vld [vmem:[%s251 + $0xb0] sm:%s244]
                  %276 = vst [vmem:[%s252 + $0x2c] sm:%s244] %v275
                  %v277 = vld [vmem:[%s251 + $0xc0] sm:%s244]
                  %278 = vst [vmem:[%s252 + $0x30] sm:%s244] %v277
                  %v279 = vld [vmem:[%s251 + $0xd0] sm:%s244]
                  %280 = vst [vmem:[%s252 + $0x34] sm:%s244] %v279
                  %v281 = vld [vmem:[%s251 + $0xe0] sm:%s244]
                  %282 = vst [vmem:[%s252 + $0x38] sm:%s244] %v281
                  %v283 = vld [vmem:[%s251 + $0xf0] sm:%s244]
                  %284 = vst [vmem:[%s252 + $0x3c] sm:%s244] %v283
                  %v285 = vld [vmem:[%s251 + $0x100] sm:%s244]
                  %286 = vst [vmem:[%s252 + $0x40] sm:%s244] %v285
                  %v287 = vld [vmem:[%s251 + $0x110] sm:%s244]
                  %288 = vst [vmem:[%s252 + $0x44] sm:%s244] %v287
                  %v289 = vld [vmem:[%s251 + $0x120] sm:%s244]
                  %290 = vst [vmem:[%s252 + $0x48] sm:%s244] %v289
                  %v291 = vld [vmem:[%s251 + $0x130] sm:%s244]
                  %292 = vst [vmem:[%s252 + $0x4c] sm:%s244] %v291
                  %v293 = vld [vmem:[%s251 + $0x140] sm:%s244]
                  %294 = vst [vmem:[%s252 + $0x50] sm:%s244] %v293
                  %v295 = vld [vmem:[%s251 + $0x150] sm:%s244]
                  %296 = vst [vmem:[%s252 + $0x54] sm:%s244] %v295
                  %v297 = vld [vmem:[%s251 + $0x160] sm:%s244]
                  %298 = vst [vmem:[%s252 + $0x58] sm:%s244] %v297
                  %v299 = vld [vmem:[%s251 + $0x170] sm:%s244]
                  %300 = vst [vmem:[%s252 + $0x5c] sm:%s244] %v299
                  %v301 = vld [vmem:[%s251 + $0x180] sm:%s244]
                  %302 = vst [vmem:[%s252 + $0x60] sm:%s244] %v301
                $region59: #{conv_block_forward.2} parent=46 // loop_footer
                  %s250 = sadd.s32 1, %s246
                $region60: #{conv_block_forward.2} parent=46 // loop_footer_branch
                  %245 = sbr.rel target = $region56
                $region61: #{conv_block_forward.2} parent=46 // loop_exit
                  _
              $region47: #{conv_block_forward.2} parent=31 // pred_fallthru
                _
            $region32: #{conv_block_forward.2} parent=27 // pred_fallthru
              _
            // Predicated region
            $region33: #{conv_block_forward.2} parent=27 // pred_check
              _
            $region34: #{conv_block_forward.2} parent=27 // pred_check_branch
              %172 = sbr.rel (0) target = $region36
            $region35: #{conv_block_forward.2} parent=27 // pred_region
              %s174 = ssub.s32 16, 1
              loop: start=0, step=1, limit=1
              $region37: #{conv_block_forward.2} parent=35 // loop_pre_header
                _
              $region38: #{conv_block_forward.2} parent=35 // loop_header
                %s176 = sphi 0, %s180
                %p177 = scmp.ge.s32.totalorder %s176, 1
                %s181 = sphi %s166, %s166
                %s182 = sphi %s164, %s164
              $region39: #{conv_block_forward.2} parent=35 // loop_header_branch
                %179 = sbr.rel (%p177) target = $region43
              $region40: #{conv_block_forward.2} parent=35 // loop_body
                %v183 = vld [vmem:[%s181] sm:%s174]
                %184 = vst [vmem:[%s182] sm:%s174] %v183
                %v185 = vld [vmem:[%s181 + $0x10] sm:%s174]
                %186 = vst [vmem:[%s182 + $0x4] sm:%s174] %v185
                %v187 = vld [vmem:[%s181 + $0x20] sm:%s174]
                %188 = vst [vmem:[%s182 + $0x8] sm:%s174] %v187
                %v189 = vld [vmem:[%s181 + $0x30] sm:%s174]
                %190 = vst [vmem:[%s182 + $0xc] sm:%s174] %v189
                %v191 = vld [vmem:[%s181 + $0x40] sm:%s174]
                %192 = vst [vmem:[%s182 + $0x10] sm:%s174] %v191
                %v193 = vld [vmem:[%s181 + $0x50] sm:%s174]
                %194 = vst [vmem:[%s182 + $0x14] sm:%s174] %v193
                %v195 = vld [vmem:[%s181 + $0x60] sm:%s174]
                %196 = vst [vmem:[%s182 + $0x18] sm:%s174] %v195
                %v197 = vld [vmem:[%s181 + $0x70] sm:%s174]
                %198 = vst [vmem:[%s182 + $0x1c] sm:%s174] %v197
                %v199 = vld [vmem:[%s181 + $0x80] sm:%s174]
                %200 = vst [vmem:[%s182 + $0x20] sm:%s174] %v199
                %v201 = vld [vmem:[%s181 + $0x90] sm:%s174]
                %202 = vst [vmem:[%s182 + $0x24] sm:%s174] %v201
                %v203 = vld [vmem:[%s181 + $0xa0] sm:%s174]
                %204 = vst [vmem:[%s182 + $0x28] sm:%s174] %v203
                %v205 = vld [vmem:[%s181 + $0xb0] sm:%s174]
                %206 = vst [vmem:[%s182 + $0x2c] sm:%s174] %v205
                %v207 = vld [vmem:[%s181 + $0xc0] sm:%s174]
                %208 = vst [vmem:[%s182 + $0x30] sm:%s174] %v207
                %v209 = vld [vmem:[%s181 + $0xd0] sm:%s174]
                %210 = vst [vmem:[%s182 + $0x34] sm:%s174] %v209
                %v211 = vld [vmem:[%s181 + $0xe0] sm:%s174]
                %212 = vst [vmem:[%s182 + $0x38] sm:%s174] %v211
                %v213 = vld [vmem:[%s181 + $0xf0] sm:%s174]
                %214 = vst [vmem:[%s182 + $0x3c] sm:%s174] %v213
                %v215 = vld [vmem:[%s181 + $0x100] sm:%s174]
                %216 = vst [vmem:[%s182 + $0x40] sm:%s174] %v215
                %v217 = vld [vmem:[%s181 + $0x110] sm:%s174]
                %218 = vst [vmem:[%s182 + $0x44] sm:%s174] %v217
                %v219 = vld [vmem:[%s181 + $0x120] sm:%s174]
                %220 = vst [vmem:[%s182 + $0x48] sm:%s174] %v219
                %v221 = vld [vmem:[%s181 + $0x130] sm:%s174]
                %222 = vst [vmem:[%s182 + $0x4c] sm:%s174] %v221
                %v223 = vld [vmem:[%s181 + $0x140] sm:%s174]
                %224 = vst [vmem:[%s182 + $0x50] sm:%s174] %v223
                %v225 = vld [vmem:[%s181 + $0x150] sm:%s174]
                %226 = vst [vmem:[%s182 + $0x54] sm:%s174] %v225
                %v227 = vld [vmem:[%s181 + $0x160] sm:%s174]
                %228 = vst [vmem:[%s182 + $0x58] sm:%s174] %v227
                %v229 = vld [vmem:[%s181 + $0x170] sm:%s174]
                %230 = vst [vmem:[%s182 + $0x5c] sm:%s174] %v229
                %v231 = vld [vmem:[%s181 + $0x180] sm:%s174]
                %232 = vst [vmem:[%s182 + $0x60] sm:%s174] %v231
              $region41: #{conv_block_forward.2} parent=35 // loop_footer
                %s180 = sadd.s32 1, %s176
              $region42: #{conv_block_forward.2} parent=35 // loop_footer_branch
                %175 = sbr.rel target = $region38
              $region43: #{conv_block_forward.2} parent=35 // loop_exit
                _
            $region36: #{conv_block_forward.2} parent=27 // pred_fallthru
              _
          $region28: #{conv_block_forward.2} parent=23 // pred_fallthru
            _
          %303 = vnop
        $region24: #{conv_block_forward.2} parent=19 // pred_fallthru
          _
      $region20: #{conv_block_forward.2} parent=5 // pred_fallthru
        _
      %p304 = scmp.le.s32.totalorder 1, %s11
      %p305 = scmp.lt.s32.totalorder %s11, 5
      %p306 = pnand %p304, %p305
      %p307 = pneg %p306
      // Predicated region
      $region62: #{conv_block_forward.2} parent=5 // pred_check
        _
      $region63: #{conv_block_forward.2} parent=5 // pred_check_branch
        %309 = sbr.rel (%p306) target = $region65
      $region64: #{conv_block_forward.2} parent=5 // pred_region
        %s310 = ssub.s32 %s11, 1
        %s311 = sand.u32 %s45, 1
        %s312 = sand.u32 %s45, 1
        %s313 = smul.addr %s312, 100
        %s314 = scalar_lea.vmem [#allocation2], %s313
        // Predicated region
        $region66: #{conv_block_forward.2} parent=64 // pred_check
          %p315 = pneg %p58
        $region67: #{conv_block_forward.2} parent=64 // pred_check_branch
          %317 = sbr.rel (%p315) target = $region69
        $region68: #{conv_block_forward.2} parent=64 // pred_region
          _
        $region69: #{conv_block_forward.2} parent=64 // pred_fallthru
          _
        %p318 = pneg %p32
        %p319 = pneg %p29
        %s320 = sand.u32 %s45, 1
        %s321 = sand.u32 %s45, 1
        %s322 = smul.addr %s321, 100
        %s323 = scalar_lea.vmem [#allocation2], %s322
        %p324 = pneg %p58
        %p325 = pneg %p55
        %p326 = pneg %p84
        %p327 = pneg %p81
        %p328 = scmp.lt.s32.totalorder %s16, 3
        %s329 = scalar_select %p328, %s16, 3
        %s330 = smul.addr %s329, 8
        %s331 = scalar_lea.vmem %s2, %s330
        %p332 = pneg %p110
        %p333 = pneg %p107
        %p334 = scmp.lt.s32.totalorder %s16, 3
        %s335 = scalar_select %p334, %s16, 3
        %s336 = smul.addr %s335, 8
        %s337 = scalar_lea.vmem %s3, %s336
        %p338 = pneg %p136
        %p339 = pneg %p133
        %p340 = scmp.lt.s32.totalorder %s16, 3
        %s341 = scalar_select %p340, %s16, 3
        %s342 = smul.addr %s341, 8
        %s343 = scalar_lea.vmem %s4, %s342
        %p344 = scmp.lt.s32.totalorder %s16, 3
        %s345 = scalar_select %p344, %s16, 3
        %s346 = smul.addr %s345, 8
        %s347 = scalar_lea.vmem %s2, %s346
        %p348 = scmp.lt.s32.totalorder %s16, 3
        %s349 = scalar_select %p348, %s16, 3
        %s350 = smul.addr %s349, 8
        %s351 = scalar_lea.vmem %s3, %s350
        %p352 = scmp.lt.s32.totalorder %s16, 3
        %s353 = scalar_select %p352, %s16, 3
        %s354 = smul.addr %s353, 8
        %s355 = scalar_lea.vmem %s4, %s354
        %v357 = vld [vmem:[%s0] sm:$0xff]
        %v358 = vld [vmem:[%s0 + $0x8] sm:$0xff]
        %v359 = vld [vmem:[%s314] sm:$0xf]
        %v360 = vld [vmem:[%s314 + $0x4] sm:$0xf]
        %v361 = vld [vmem:[%s314 + $0x8] sm:$0xf]
        %v362 = vld [vmem:[%s314 + $0xc] sm:$0xf]
        %v363 = vld [vmem:[%s314 + $0x10] sm:$0xf]
        %v364 = vld [vmem:[%s314 + $0x14] sm:$0xf]
        %v365 = vld [vmem:[%s314 + $0x18] sm:$0xf]
        %v366 = vld [vmem:[%s314 + $0x1c] sm:$0xf]
        %v367 = vld [vmem:[%s314 + $0x20] sm:$0xf]
        %v368 = vld [vmem:[%s314 + $0x24] sm:$0xf]
        %v369 = vld [vmem:[%s314 + $0x28] sm:$0xf]
        %v370 = vld [vmem:[%s314 + $0x2c] sm:$0xf]
        %v371 = vld [vmem:[%s314 + $0x30] sm:$0xf]
        %v372 = vld [vmem:[%s314 + $0x34] sm:$0xf]
        %v373 = vld [vmem:[%s314 + $0x38] sm:$0xf]
        %v374 = vld [vmem:[%s314 + $0x3c] sm:$0xf]
        %v375 = vld [vmem:[%s314 + $0x40] sm:$0xf]
        %v376 = vld [vmem:[%s314 + $0x44] sm:$0xf]
        %v377 = vld [vmem:[%s314 + $0x48] sm:$0xf]
        %v378 = vld [vmem:[%s314 + $0x4c] sm:$0xf]
        %v379 = vld [vmem:[%s314 + $0x50] sm:$0xf]
        %v380 = vld [vmem:[%s314 + $0x54] sm:$0xf]
        %v381 = vld [vmem:[%s314 + $0x58] sm:$0xf]
        %v382 = vld [vmem:[%s314 + $0x5c] sm:$0xf]
        %v383 = vld [vmem:[%s314 + $0x60] sm:$0xf]
        %v386 = vunpack.c.l.b16 %v357
        %v387 = vunpack.c.h.b16 %v357
        %v388 = vunpack.c.l.b16 %v358
        %v389 = vunpack.c.h.b16 %v358
        %v390 = vpack.c.b16 %v388, %v386
        %v391 = vpack.c.b16 %v389, %v387
        %v418 = vunpack.c.l.b16 %v359
        %v419 = vunpack.c.l.b16 %v360
        %v420 = vunpack.c.l.b16 %v361
        %v421 = vunpack.c.l.b16 %v362
        %v422 = vunpack.c.l.b16 %v363
        %v423 = vunpack.c.l.b16 %v364
        %v424 = vunpack.c.l.b16 %v365
        %v425 = vunpack.c.l.b16 %v366
        %v426 = vunpack.c.l.b16 %v367
        %v427 = vunpack.c.l.b16 %v368
        %v428 = vunpack.c.l.b16 %v369
        %v429 = vunpack.c.l.b16 %v370
        %v430 = vunpack.c.l.b16 %v371
        %v431 = vunpack.c.l.b16 %v372
        %v432 = vunpack.c.l.b16 %v373
        %v433 = vunpack.c.l.b16 %v374
        %v434 = vunpack.c.l.b16 %v375
        %v435 = vunpack.c.l.b16 %v376
        %v436 = vunpack.c.l.b16 %v377
        %v437 = vunpack.c.l.b16 %v378
        %v438 = vunpack.c.l.b16 %v379
        %v439 = vunpack.c.l.b16 %v380
        %v440 = vunpack.c.l.b16 %v381
        %v441 = vunpack.c.l.b16 %v382
        %v442 = vunpack.c.l.b16 %v383
        %v443 = vpack.c.b16 %v419, %v418
        %v444 = vpack.c.b16 %v421, %v420
        %v445 = vpack.c.b16 %v423, %v422
        %v446 = vpack.c.b16 %v425, %v424
        %v447 = vpack.c.b16 %v427, %v426
        %v448 = vpack.c.b16 %v429, %v428
        %v449 = vpack.c.b16 %v431, %v430
        %v450 = vpack.c.b16 %v433, %v432
        %v451 = vpack.c.b16 %v435, %v434
        %v452 = vpack.c.b16 %v437, %v436
        %v453 = vpack.c.b16 %v439, %v438
        %v454 = vpack.c.b16 %v441, %v440
        %v455 = vpack.c.b16 %v442, %v442
        %vm468 = vcmask 588800
        %v470 = vsel %vm468, %v391, 0
        %vm472 = vcmask 1043456
        %v474 = vsel %vm472, %v455, 0
        %476 = vmatprep.subr.bf16.mxu0 0
        %477 = vmatpush1.bf16.msra.mxu0 %v450
        %478 = vmatprep.subr.bf16.mxu0 0
        %479 = vmatpush1.bf16.msra.mxu0 %v449
        %480 = vmatprep.subr.bf16.mxu0 0
        %481 = vmatpush1.bf16.msra.mxu0 %v448
        %482 = vmatprep.subr.bf16.mxu0 0
        %483 = vmatpush1.bf16.msra.mxu0 %v447
        %484 = vmatprep.subr.bf16.mxu0 0
        %485 = vmatpush1.bf16.msra.mxu0 %v446
        %486 = vmatprep.subr.bf16.mxu0 0
        %487 = vmatpush1.bf16.msra.mxu0 %v445
        %488 = vmatprep.subr.bf16.mxu0 0
        %489 = vmatpush1.bf16.msra.mxu0 %v444
        %490 = vmatprep.subr.bf16.mxu0 0
        %491 = vmatpush1.bf16.msra.mxu0 %v443
        %492 = vmatprep.subr.bf16.mxu0 0
        %493 = vmatpush2.bf16.msra.mxu0 0
        %494 = vmatprep.subr.bf16.mxu0 0
        %495 = vmatpush2.bf16.msra.mxu0 0
        %496 = vmatprep.subr.bf16.mxu0 0
        %497 = vmatpush2.bf16.msra.mxu0 0
        %498 = vmatprep.subr.bf16.mxu0 0
        %499 = vmatpush2.bf16.msra.mxu0 %v474
        %500 = vmatprep.subr.bf16.mxu0 0
        %501 = vmatpush2.bf16.msra.mxu0 %v454
        %502 = vmatprep.subr.bf16.mxu0 0
        %503 = vmatpush2.bf16.msra.mxu0 %v453
        %504 = vmatprep.subr.bf16.mxu0 0
        %505 = vmatpush2.bf16.msra.mxu0 %v452
        %506 = vmatprep.subr.bf16.mxu0 0
        %507 = vmatpush2.bf16.msra.mxu0 %v451
        %508 = vmatprep.mubr.bf16.mxu0 %v470
        %509 = vmatmul.mubr.bf16.gmra.mxu0 %v390
        %v510 = vpop.f32.mrf.mxu0
        %v511 = vadd.f32 0.0, %v510
        %v512 = vpop.f32.mrf.mxu0
        %v513 = vpop.f32.mrf.mxu0
        %v514 = vadd.f32 0.0, %v513
        %v515 = vpop.f32.mrf.mxu0
        %516 = vdwg.mxu0
        %v517 = vmul.f32 %v511, %v511
        %v518 = vmul.f32 %v514, %v514
        %v519 = vadd.f32 %v517, %v518
        %520 = vst [vmem:[%s347] sm:$0xff] %v519
        %521 = vadd.xlane.f32.xlu0 %v519
        %v522 = vpop.xlane.xlu0 %521
        %v523 = vmul.f32 %v519, %v519
        %524 = vadd.xlane.f32.xlu0 %v523
        %v525 = vpop.xlane.xlu0 %524
        %526 = vst [vmem:[%s351] sm:$0xff] %v522
        %527 = vst [vmem:[%s355] sm:$0xff] %v525
        %p528 = scmp.lt.s32.totalorder %s16, 3
        %s529 = scalar_select %p528, %s16, 3
        %s530 = smul.addr %s529, 8
        %s531 = scalar_lea.vmem %s2, %s530
        %p532 = scmp.lt.s32.totalorder %s16, 3
        %s533 = scalar_select %p532, %s16, 3
        %s534 = smul.addr %s533, 8
        %s535 = scalar_lea.vmem %s3, %s534
        %p536 = scmp.lt.s32.totalorder %s16, 3
        %s537 = scalar_select %p536, %s16, 3
        %s538 = smul.addr %s537, 8
        %s539 = scalar_lea.vmem %s4, %s538
        // Predicated region
        $region70: #{conv_block_forward.2} parent=64 // pred_check
          %p540 = pneg %p81
        $region71: #{conv_block_forward.2} parent=64 // pred_check_branch
          %542 = sbr.rel (%p540) target = $region73
        $region72: #{conv_block_forward.2} parent=64 // pred_region
          _
        $region73: #{conv_block_forward.2} parent=64 // pred_fallthru
          _
        // Predicated region
        $region74: #{conv_block_forward.2} parent=64 // pred_check
          %p543 = pneg %p107
        $region75: #{conv_block_forward.2} parent=64 // pred_check_branch
          %545 = sbr.rel (%p543) target = $region77
        $region76: #{conv_block_forward.2} parent=64 // pred_region
          _
        $region77: #{conv_block_forward.2} parent=64 // pred_fallthru
          _
        // Predicated region
        $region78: #{conv_block_forward.2} parent=64 // pred_check
          %p546 = pneg %p133
        $region79: #{conv_block_forward.2} parent=64 // pred_check_branch
          %548 = sbr.rel (%p546) target = $region81
        $region80: #{conv_block_forward.2} parent=64 // pred_region
          _
        $region81: #{conv_block_forward.2} parent=64 // pred_fallthru
          _
      $region65: #{conv_block_forward.2} parent=5 // pred_fallthru
        _
      %p549 = scmp.le.s32.totalorder 2, %s11
      // Predicated region
      $region82: #{conv_block_forward.2} parent=5 // pred_check
        %p550 = pneg %p549
      $region83: #{conv_block_forward.2} parent=5 // pred_check_branch
        %552 = sbr.rel (%p550) target = $region85
      $region84: #{conv_block_forward.2} parent=5 // pred_region
        %s553 = ssub.s32 %s11, 2
        // Predicated region
        $region86: #{conv_block_forward.2} parent=84 // pred_check
          %p554 = pneg %p87
        $region87: #{conv_block_forward.2} parent=84 // pred_check_branch
          %556 = sbr.rel (%p554) target = $region89
        $region88: #{conv_block_forward.2} parent=84 // pred_region
          %p557 = scmp.lt.s32.totalorder %s17, 3
          %s558 = scalar_select %p557, %s17, 3
          %s559 = smul.addr %s558, 8
          %s560 = scalar_lea.vmem %s2, %s559
        $region89: #{conv_block_forward.2} parent=84 // pred_fallthru
          _
        // Predicated region
        $region90: #{conv_block_forward.2} parent=84 // pred_check
          %p561 = pneg %p113
        $region91: #{conv_block_forward.2} parent=84 // pred_check_branch
          %563 = sbr.rel (%p561) target = $region93
        $region92: #{conv_block_forward.2} parent=84 // pred_region
          %p564 = scmp.lt.s32.totalorder %s17, 3
          %s565 = scalar_select %p564, %s17, 3
          %s566 = smul.addr %s565, 8
          %s567 = scalar_lea.vmem %s3, %s566
        $region93: #{conv_block_forward.2} parent=84 // pred_fallthru
          _
        // Predicated region
        $region94: #{conv_block_forward.2} parent=84 // pred_check
          %p568 = pneg %p139
        $region95: #{conv_block_forward.2} parent=84 // pred_check_branch
          %570 = sbr.rel (%p568) target = $region97
        $region96: #{conv_block_forward.2} parent=84 // pred_region
          %p571 = scmp.lt.s32.totalorder %s17, 3
          %s572 = scalar_select %p571, %s17, 3
          %s573 = smul.addr %s572, 8
          %s574 = scalar_lea.vmem %s4, %s573
        $region97: #{conv_block_forward.2} parent=84 // pred_fallthru
          _
      $region85: #{conv_block_forward.2} parent=5 // pred_fallthru
        _
    $region6: #{conv_block_forward.2} parent=1 // loop_footer
      %s15 = sadd.s32 1, %s11
    $region7: #{conv_block_forward.2} parent=1 // loop_footer_branch
      %10 = sbr.rel target = $region3
    $region8: #{conv_block_forward.2} parent=1 // loop_exit
      _

</llo_original>
